<compile_context>
chip_gen: v7x
topology: tpu7x:2x2x1
jax: 0.10.0
libtpu: 0.0.40
codegen_flags: <defaults>
</compile_context>

<pallas_src>
import functools

import jax
import jax.numpy as jnp
from jax import lax
from jax.experimental import pallas as pl
from jax.experimental.pallas import tpu as pltpu

EPS = 0.01  # nn.BatchNorm1d(128, 0.01) -> eps = 0.01


def _round_up(n, m):
    return ((n + m - 1) // m) * m


# --------------------------------------------------------------------------
# Kernels
# --------------------------------------------------------------------------

def _matmul_stats_kernel(x_ref, w_ref, z_ref, psum_ref, psq_ref):
    """z = x @ W (bf16 MXU inputs, f32 accumulation) + per-tile column stats."""
    x = x_ref[...].astype(jnp.bfloat16)           # bf16 for the MXU
    z = jnp.dot(x, w_ref[...], preferred_element_type=jnp.float32)
    z_ref[...] = z
    psum_ref[...] = jnp.sum(z, axis=0, keepdims=True)
    psq_ref[...] = jnp.sum(z * z, axis=0, keepdims=True)


def _bn_res_matmul_stats_kernel(z_ref, r_ref, scale_ref, shift_ref, w_ref,
                                h_ref, z2_ref, psum_ref, psq_ref,
                                *, tm, b_true, needs_mask):
    """h = relu(z*scale + shift) + r   (BN affine folded into one FMA)
       z2 = h @ W_next (bf16 MXU, f32 accum) + per-tile column stats of z2."""
    h = jnp.maximum(z_ref[...] * scale_ref[...] + shift_ref[...], 0.0) + r_ref[...]
    if needs_mask:
        # Zero padded rows so they contribute nothing to the next layer's stats.
        rows = pl.program_id(0) * tm + lax.broadcasted_iota(jnp.int32, (tm, 1), 0)
        h = jnp.where(rows < b_true, h, 0.0)
    h_ref[...] = h
    z2 = jnp.dot(h.astype(jnp.bfloat16), w_ref[...],
                 preferred_element_type=jnp.float32)
    z2_ref[...] = z2
    psum_ref[...] = jnp.sum(z2, axis=0, keepdims=True)
    psq_ref[...] = jnp.sum(z2 * z2, axis=0, keepdims=True)


def _bn_res_out_kernel(z_ref, r_ref, scale_ref, shift_ref, o_ref, *, binary):
    """y = act3(z*scale + shift) + r  (Tanh head if binary, else ReLU)."""
    a = z_ref[...] * scale_ref[...] + shift_ref[...]
    a = jnp.tanh(a) if binary else jnp.maximum(a, 0.0)
    o_ref[...] = (a + r_ref[...]).astype(o_ref.dtype)


# --------------------------------------------------------------------------
# Wrapper
# --------------------------------------------------------------------------

def _scale_shift(psum, psq, gamma, beta, n):
    """Combine per-tile partial sums -> full-batch BN scale/shift (tiny JAX op)."""
    s = jnp.sum(psum, axis=0)                    # (1, D)
    sq = jnp.sum(psq, axis=0)                    # (1, D)
    mean = s / n
    var = sq / n - mean * mean                   # one-pass biased variance
    scale = gamma * lax.rsqrt(var + EPS)
    shift = beta - mean * scale
    return scale, shift


def generator_forward(x, params, *, binary, block_m=512):
    """x: [B, 128] float32; params: pre-transposed weights [in,out] + BN affine."""
    B, Din = x.shape
    H = params["w1"].shape[1]
    Dout = params["w3"].shape[1]
    assert Din == H == Dout, "residual adds require input_dim == output_dim == 128"

    # Batch tiling (sublane aligned). Padded rows are zero and masked out of BN.
    TM = _round_up(min(block_m, B), 8)
    B_pad = _round_up(B, TM)
    T = B_pad // TM
    needs_mask = B_pad != B
    xp = jnp.pad(x, ((0, B_pad - B), (0, 0))) if needs_mask else x

    # Weights cast once to bf16 for the MXU (f32 accumulation inside kernels).
    w1 = params["w1"].astype(jnp.bfloat16)
    w2 = params["w2"].astype(jnp.bfloat16)
    w3 = params["w3"].astype(jnp.bfloat16)

    par = pltpu.CompilerParams(dimension_semantics=("parallel",))
    act_spec = lambda d: pl.BlockSpec((TM, d), lambda i: (i, 0))     # per-tile
    vec_spec = lambda d: pl.BlockSpec((1, d), lambda i: (0, 0))      # VMEM-resident
    w_spec = lambda di, do: pl.BlockSpec((di, do), lambda i: (0, 0))  # VMEM-resident
    stat_spec = lambda d: pl.BlockSpec((None, 1, d), lambda i: (i, 0, 0))
    act_shape = lambda d: jax.ShapeDtypeStruct((B_pad, d), jnp.float32)
    stat_shape = lambda d: jax.ShapeDtypeStruct((T, 1, d), jnp.float32)

    # ---- stage 1: z1 = x @ W1, per-tile stats ------------------------------
    z1, ps1, pq1 = pl.pallas_call(
        _matmul_stats_kernel,
        out_shape=(act_shape(H), stat_shape(H), stat_shape(H)),
        grid=(T,),
        in_specs=[act_spec(Din), w_spec(Din, H)],
        out_specs=(act_spec(H), stat_spec(H), stat_spec(H)),
        compiler_params=par,
    )(xp, w1)
    sc1, sh1 = _scale_shift(ps1, pq1, params["g1"], params["b1"], B)

    # ---- stage 2: h1 = relu(BN1(z1)) + x ; z2 = h1 @ W2, stats -------------
    mid_kernel = functools.partial(_bn_res_matmul_stats_kernel,
                                   tm=TM, b_true=B, needs_mask=needs_mask)
    h1, z2, ps2, pq2 = pl.pallas_call(
        mid_kernel,
        out_shape=(act_shape(H), act_shape(H), stat_shape(H), stat_shape(H)),
        grid=(T,),
        in_specs=[act_spec(H), act_spec(H), vec_spec(H), vec_spec(H), w_spec(H, H)],
        out_specs=(act_spec(H), act_spec(H), stat_spec(H), stat_spec(H)),
        compiler_params=par,
    )(z1, xp, sc1, sh1, w2)
    sc2, sh2 = _scale_shift(ps2, pq2, params["g2"], params["b2"], B)

    # ---- stage 3: h2 = relu(BN2(z2)) + h1 ; z3 = h2 @ W3, stats ------------
    h2, z3, ps3, pq3 = pl.pallas_call(
        mid_kernel,
        out_shape=(act_shape(H), act_shape(Dout), stat_shape(Dout), stat_shape(Dout)),
        grid=(T,),
        in_specs=[act_spec(H), act_spec(H), vec_spec(H), vec_spec(H), w_spec(H, Dout)],
        out_specs=(act_spec(H), act_spec(Dout), stat_spec(Dout), stat_spec(Dout)),
        compiler_params=par,
    )(z2, h1, sc2, sh2, w3)
    sc3, sh3 = _scale_shift(ps3, pq3, params["g3"], params["b3"], B)

    # ---- stage 4: y = act3(BN3(z3)) + h2 -----------------------------------
    y = pl.pallas_call(
        functools.partial(_bn_res_out_kernel, binary=binary),
        out_shape=act_shape(Dout),
        grid=(T,),
        in_specs=[act_spec(Dout), act_spec(Dout), vec_spec(Dout), vec_spec(Dout)],
        out_specs=act_spec(Dout),
        compiler_params=par,
    )(z3, h2, sc3, sh3)

    return y[:B] if needs_mask else y


# --------------------------------------------------------------------------
# Parameters & references
# --------------------------------------------------------------------------

def init_params(key, input_dim, output_dim, hidden=128):
    """PyTorch-default-style init. Linear weights stored pre-transposed [in, out]."""
    k1, k2, k3 = jax.random.split(key, 3)

    def linear_w(k, fan_in, fan_out):
        bound = 1.0 / jnp.sqrt(fan_in)
        return jax.random.uniform(k, (fan_in, fan_out), jnp.float32, -bound, bound)

    return {
        "w1": linear_w(k1, input_dim, hidden),
        "g1": jnp.ones((1, hidden), jnp.float32),
        "b1": jnp.zeros((1, hidden), jnp.float32),
        "w2": linear_w(k2, hidden, hidden),
        "g2": jnp.ones((1, hidden), jnp.float32),
        "b2": jnp.zeros((1, hidden), jnp.float32),
        "w3": linear_w(k3, hidden, output_dim),
        "g3": jnp.ones((1, output_dim), jnp.float32),
        "b3": jnp.zeros((1, output_dim), jnp.float32),
    }


def generator_ref_f32(x, params, *, binary):
    """Pure-f32 reference (module spec): loose sanity check vs bf16 kernel."""
    relu = lambda v: jnp.maximum(v, 0.0)
    act3 = jnp.tanh if binary else relu

    def bn(z):
        mean = jnp.mean(z, axis=0, keepdims=True)
        var = jnp.mean((z - mean) ** 2, axis=0, keepdims=True)
        return (z - mean) / jnp.sqrt(var + EPS)

    h1 = relu(params["g1"] * bn(x @ params["w1"]) + params["b1"]) + x
    h2 = relu(params["g2"] * bn(h1 @ params["w2"]) + params["b2"]) + h1
    return act3(params["g3"] * bn(h2 @ params["w3"]) + params["b3"]) + h2


def generator_ref_bf16(x, params, *, binary):
    """Reference mirroring the kernel numerics (bf16 MXU inputs, f32 accum,
    one-pass variance, folded BN affine) for a tight correctness check."""
    relu = lambda v: jnp.maximum(v, 0.0)
    act3 = jnp.tanh if binary else relu

    def mm(a, w):
        return jnp.dot(a.astype(jnp.bfloat16), w.astype(jnp.bfloat16),
                       preferred_element_type=jnp.float32)

    def bn(z, g, b):
        mean = jnp.mean(z, axis=0, keepdims=True)
        var = jnp.mean(z * z, axis=0, keepdims=True) - mean * mean
        scale = g * lax.rsqrt(var + EPS)
        shift = b - mean * scale
        return z * scale + shift

    h1 = relu(bn(mm(x, params["w1"]), params["g1"], params["b1"])) + x
    h2 = relu(bn(mm(h1, params["w2"]), params["g2"], params["b2"])) + h1
    return act3(bn(mm(h2, params["w3"]), params["g3"], params["b3"])) + h2


if __name__ == "__main__":
    # Residual adds force input_dim == output_dim == hidden (=128).
    D = 128
    key = jax.random.PRNGKey(0)

    # (B, binary head, batch tile): second case exercises padding/masking path.
    for B, binary, block_m in ((256, True, 128), (200, False, 128)):
        key, kx, kp = jax.random.split(key, 3)
        x = jax.random.normal(kx, (B, D), jnp.float32)
        params = init_params(kp, input_dim=D, output_dim=D)

        out = jax.block_until_ready(
            generator_forward(x, params, binary=binary, block_m=block_m))
        assert out.shape == (B, D)

        ref_exact = generator_ref_bf16(x, params, binary=binary)
        assert jnp.allclose(out, ref_exact, atol=2e-3, rtol=2e-3), \
            "mismatch vs bf16-matched reference"

        ref_f32 = generator_ref_f32(x, params, binary=binary)
        assert jnp.allclose(out, ref_f32, atol=1e-1, rtol=1e-1), \
            "mismatch vs f32 reference"

    print("KERNEL_OK")
</pallas_src>

<mosaic_0001>
module attributes {stable_mosaic.version = 11 : i64} {
  func.func @_matmul_stats_kernel(%arg0: i32, %arg1: memref<128x128xf32, #tpu.memory_space<vmem>>, %arg2: memref<128x128xbf16, #tpu.memory_space<vmem>>, %arg3: memref<128x128xf32, #tpu.memory_space<vmem>>, %arg4: memref<1x1x128xf32, #tpu.memory_space<vmem>>, %arg5: memref<1x1x128xf32, #tpu.memory_space<vmem>>) attributes {dimension_semantics = [#tpu.dimension_semantics<parallel>], iteration_bounds = array<i64: 2>, scalar_prefetch = 0 : i64, scratch_operands = 0 : i64, tpu.core_type = #tpu.core_type<tc>, window_params = [{transform_indices = @transform_0, window_bounds = array<i64: 128, 128>}, {pipeline_mode = #tpu.pipeline_mode<synchronous>, transform_indices = @transform_1, window_bounds = array<i64: 128, 128>}, {transform_indices = @transform_2, window_bounds = array<i64: 128, 128>}, {transform_indices = @transform_3, window_bounds = array<i64: 1, 1, 128>}, {transform_indices = @transform_4, window_bounds = array<i64: 1, 1, 128>}]} {
    %c0 = arith.constant 0 : index
    %c0_0 = arith.constant 0 : index
    %0 = vector.load %arg1[%c0, %c0_0] : memref<128x128xf32, #tpu.memory_space<vmem>>, vector<128x128xf32>
    %1 = arith.truncf %0 : vector<128x128xf32> to vector<128x128xbf16>
    %c0_1 = arith.constant 0 : index
    %c0_2 = arith.constant 0 : index
    %2 = vector.load %arg2[%c0_1, %c0_2] : memref<128x128xbf16, #tpu.memory_space<vmem>>, vector<128x128xbf16>
    %cst = arith.constant dense<0.000000e+00> : vector<128x128xf32>
    %3 = tpu.matmul %1, %2, %cst {dimension_numbers = #tpu.dot_dimension_numbers<[1], [0], [0], [1], [0, 0, 1, 1], [], []>} : vector<128x128xbf16>, vector<128x128xbf16>, vector<128x128xf32> -> vector<128x128xf32>
    %c0_3 = arith.constant 0 : index
    %c0_4 = arith.constant 0 : index
    %4 = vector.load %arg3[%c0_3, %c0_4] : memref<128x128xf32, #tpu.memory_space<vmem>>, vector<128x128xf32>
    tpu.vector_store %arg3[%c0_3, %c0_4], %3 {strides = array<i32>} : memref<128x128xf32, #tpu.memory_space<vmem>>, vector<128x128xf32>,
    %cst_5 = arith.constant dense<0.000000e+00> : vector<128xf32>
    %5 = vector.multi_reduction <add>, %3, %cst_5 [0] : vector<128x128xf32> to vector<128xf32>
    %6 = vector.shape_cast %5 : vector<128xf32> to vector<1x128xf32>
    %c0_6 = arith.constant 0 : index
    %c0_7 = arith.constant 0 : index
    %c0_8 = arith.constant 0 : index
    %7 = vector.load %arg4[%c0_6, %c0_7, %c0_8] : memref<1x1x128xf32, #tpu.memory_space<vmem>>, vector<1x1x128xf32>
    %8 = vector.shape_cast %7 : vector<1x1x128xf32> to vector<1x128xf32>
    %9 = vector.shape_cast %6 : vector<1x128xf32> to vector<1x1x128xf32>
    tpu.vector_store %arg4[%c0_6, %c0_7, %c0_8], %9 {strides = array<i32>} : memref<1x1x128xf32, #tpu.memory_space<vmem>>, vector<1x1x128xf32>,
    %10 = arith.mulf %3, %3 : vector<128x128xf32>
    %cst_9 = arith.constant dense<0.000000e+00> : vector<128xf32>
    %11 = vector.multi_reduction <add>, %10, %cst_9 [0] : vector<128x128xf32> to vector<128xf32>
    %12 = vector.shape_cast %11 : vector<128xf32> to vector<1x128xf32>
    %c0_10 = arith.constant 0 : index
    %c0_11 = arith.constant 0 : index
    %c0_12 = arith.constant 0 : index
    %13 = vector.load %arg5[%c0_10, %c0_11, %c0_12] : memref<1x1x128xf32, #tpu.memory_space<vmem>>, vector<1x1x128xf32>
    %14 = vector.shape_cast %13 : vector<1x1x128xf32> to vector<1x128xf32>
    %15 = vector.shape_cast %12 : vector<1x128xf32> to vector<1x1x128xf32>
    tpu.vector_store %arg5[%c0_10, %c0_11, %c0_12], %15 {strides = array<i32>} : memref<1x1x128xf32, #tpu.memory_space<vmem>>, vector<1x1x128xf32>,
    return
  }
  func.func @transform_0(%arg0: i32) -> (i32, i32) {
    %c0_i32 = arith.constant 0 : i32
    %c0_i32_0 = arith.constant 0 : i32
    return %arg0, %c0_i32 : i32, i32
  }
  func.func @transform_1(%arg0: i32) -> (i32, i32) {
    %c0_i32 = arith.constant 0 : i32
    %c0_i32_0 = arith.constant 0 : i32
    %c0_i32_1 = arith.constant 0 : i32
    return %c0_i32, %c0_i32_0 : i32, i32
  }
  func.func @transform_2(%arg0: i32) -> (i32, i32) {
    %c0_i32 = arith.constant 0 : i32
    %c0_i32_0 = arith.constant 0 : i32
    return %arg0, %c0_i32 : i32, i32
  }
  func.func @transform_3(%arg0: i32) -> (i32, i32, i32) {
    %c0_i32 = arith.constant 0 : i32
    %c0_i32_0 = arith.constant 0 : i32
    %c0_i32_1 = arith.constant 0 : i32
    return %arg0, %c0_i32, %c0_i32_0 : i32, i32, i32
  }
  func.func @transform_4(%arg0: i32) -> (i32, i32, i32) {
    %c0_i32 = arith.constant 0 : i32
    %c0_i32_0 = arith.constant 0 : i32
    %c0_i32_1 = arith.constant 0 : i32
    return %arg0, %c0_i32, %c0_i32_0 : i32, i32, i32
  }
}

</mosaic_0001>

<llo_original>
// kernel: tpu_custom_call.1
$region0: #{tpu_custom_call.1}
  #allocation0 [shape = 'u32[]', space=smem, size = 0x4, offset = 0x4, fixed_abs, tag = 'smem constant byte address 0x4 - core index']
  #allocation1 [shape = 'u32[144,128]{1,0:T(1,128)}', space=vmem, size = 0x12000, scoped, tag = 'internal scratch']
  %s0 = inlined_call_operand.hbm [shape: f32[256,128], index: 0, kind: input, shape index: {}]
  %s1 = inlined_call_operand.hbm [shape: bf16[128,128], index: 1, kind: input, shape index: {}]
  %s2 = inlined_call_operand.hbm [shape: f32[256,128], index: 2, kind: output, shape index: {0}]
  %s3 = inlined_call_operand.hbm [shape: f32[2,1,128], index: 3, kind: output, shape index: {1}]
  %s4 = inlined_call_operand.hbm [shape: f32[2,1,128], index: 4, kind: output, shape index: {2}]
  %5 = xla_tuple %s2, %s3, %s4
  %s6 = sld [smem:[#allocation0]]
  $region65: #{tpu_custom_call.1} parent=0
    _
  %s8 = ssub.s32 1, %s6
  %s9 = scalar_select 0, %s8, %s6
  $region1: #{tpu_custom_call.1} parent=0
    #allocation2 [shape = 'u8[131072]{0}', space=vmem, size = 0x20000, scoped, tag = 'input window, operand 0']
    #allocation3 [shape = 's32[2]{0}', space=sflag, size = 0x8, scoped, tag = 'scoped memory for tpu_custom_call.1']
    #allocation4 [shape = 's32[2]{0}', space=sflag, size = 0x8, scoped, tag = 'scoped memory for tpu_custom_call.1']
    #allocation5 [shape = 'u8[32768]{0}', space=vmem, size = 0x8000, scoped, tag = 'input window, operand 1, single buffered']
    #allocation6 [shape = 's32[1]{0}', space=sflag, size = 0x4, scoped, tag = 'scoped memory for tpu_custom_call.1']
    #allocation7 [shape = 'u8[131072]{0}', space=vmem, size = 0x20000, scoped, tag = 'output window, operand 0']
    #allocation8 [shape = 'u8[1024]{0}', space=vmem, size = 0x400, scoped, tag = 'output window, operand 1']
    #allocation9 [shape = 's32[2]{0}', space=sflag, size = 0x8, scoped, tag = 'scoped memory for tpu_custom_call.1']
    #allocation10 [shape = 'u8[1024]{0}', space=vmem, size = 0x400, scoped, tag = 'output window, operand 2']
    %10 = vsyncpa [#allocation3], 0
    %s11 = scalar_lea.sflag [#allocation3], 1
    %12 = vsyncpa %s11, 0
    %13 = vsyncpa [#allocation6], 0
    %14 = vsyncpa [#allocation4], 0
    %s15 = scalar_lea.sflag [#allocation4], 1
    %16 = vsyncpa %s15, 0
    %17 = vsyncpa [#allocation9], 0
    %s18 = scalar_lea.sflag [#allocation9], 1
    %19 = vsyncpa %s18, 0
    loop: start=0, step=1, limit=4
    $region2: #{tpu_custom_call.1} parent=1 // loop_pre_header
      _
    $region3: #{tpu_custom_call.1} parent=1 // loop_header
      %s21 = sphi 0, %s25
      %p22 = scmp.ge.s32.totalorder %s21, 4
      %s31 = sphi 0, %s33
      %s34 = sphi 0, %s31
      %s35 = sphi 0, %s34
      %s51 = sphi 0, %s35
      %s55 = sphi 0, %s55
      %s57 = sphi 0, %s55
      %s58 = sphi 0, %s57
      %s72 = sphi 0, %s58
      %s78 = sphi 0, %s80
      %s81 = sphi 0, %s78
      %s82 = sphi 0, %s81
      %s98 = sphi 0, %s82
      %s104 = sphi 0, %s106
      %s107 = sphi 0, %s104
      %s108 = sphi 0, %s107
      %s124 = sphi 0, %s108
      %s130 = sphi 0, %s132
      %s133 = sphi 0, %s130
      %s134 = sphi 0, %s133
      %s150 = sphi 0, %s134
    $region4: #{tpu_custom_call.1} parent=1 // loop_header_branch
      %24 = sbr.rel (%p22) target = $region8
    $region5: #{tpu_custom_call.1} parent=1 // loop_body
      %s26 = ssub.s32 %s21, 1
      %s27 = ssub.s32 %s21, 2
      %s28 = sadd.s32 %s21, 1
      %s29 = ssub.s32 %s21, %s28
      %p30 = scmp.eq.s32.totalorder %s29, 0
      %s32 = sadd.s32 %s31, 1
      %s33 = scalar_select %p30, %s31, %s32
      %p36 = pneg %p30
      %p37 = scmp.eq.s32.totalorder %s21, 1
      %p38 = por %p36, %p37
      %p39 = scmp.ne.s32.totalorder %s31, %s34
      %p40 = scmp.eq.s32.totalorder %s21, 0
      %p41 = por %p39, %p40
      %p42 = scmp.ne.s32.totalorder %s31, %s34
      %p43 = scmp.eq.s32.totalorder %s26, 1
      %p44 = por %p42, %p43
      %p45 = scmp.ne.s32.totalorder %s34, %s35
      %p46 = scmp.eq.s32.totalorder %s26, 0
      %p47 = por %p45, %p46
      %p48 = scmp.ne.s32.totalorder %s34, %s35
      %p49 = scmp.eq.s32.totalorder %s27, 1
      %p50 = por %p48, %p49
      %p52 = scmp.ne.s32.totalorder %s35, %s51
      %p53 = scmp.eq.s32.totalorder %s27, 0
      %p54 = por %p52, %p53
      %s56 = sadd.s32 %s55, 1
      %p59 = scmp.eq.s32.totalorder %s21, 1
      %p60 = scmp.ne.s32.totalorder %s55, %s57
      %p61 = scmp.eq.s32.totalorder %s21, 0
      %p62 = por %p60, %p61
      %p63 = scmp.ne.s32.totalorder %s55, %s57
      %p64 = scmp.eq.s32.totalorder %s26, 1
      %p65 = por %p63, %p64
      %p66 = scmp.ne.s32.totalorder %s57, %s58
      %p67 = scmp.eq.s32.totalorder %s26, 0
      %p68 = por %p66, %p67
      %p69 = scmp.ne.s32.totalorder %s57, %s58
      %p70 = scmp.eq.s32.totalorder %s27, 1
      %p71 = por %p69, %p70
      %p73 = scmp.ne.s32.totalorder %s58, %s72
      %p74 = scmp.eq.s32.totalorder %s27, 0
      %p75 = por %p73, %p74
      %s76 = ssub.s32 %s21, %s28
      %p77 = scmp.eq.s32.totalorder %s76, 0
      %s79 = sadd.s32 %s78, 1
      %s80 = scalar_select %p77, %s78, %s79
      %p83 = pneg %p77
      %p84 = scmp.eq.s32.totalorder %s21, 1
      %p85 = por %p83, %p84
      %p86 = scmp.ne.s32.totalorder %s78, %s81
      %p87 = scmp.eq.s32.totalorder %s21, 0
      %p88 = por %p86, %p87
      %p89 = scmp.ne.s32.totalorder %s78, %s81
      %p90 = scmp.eq.s32.totalorder %s26, 1
      %p91 = por %p89, %p90
      %p92 = scmp.ne.s32.totalorder %s81, %s82
      %p93 = scmp.eq.s32.totalorder %s26, 0
      %p94 = por %p92, %p93
      %p95 = scmp.ne.s32.totalorder %s81, %s82
      %p96 = scmp.eq.s32.totalorder %s27, 1
      %p97 = por %p95, %p96
      %p99 = scmp.ne.s32.totalorder %s82, %s98
      %p100 = scmp.eq.s32.totalorder %s27, 0
      %p101 = por %p99, %p100
      %s102 = ssub.s32 %s21, %s28
      %p103 = scmp.eq.s32.totalorder %s102, 0
      %s105 = sadd.s32 %s104, 1
      %s106 = scalar_select %p103, %s104, %s105
      %p109 = pneg %p103
      %p110 = scmp.eq.s32.totalorder %s21, 1
      %p111 = por %p109, %p110
      %p112 = scmp.ne.s32.totalorder %s104, %s107
      %p113 = scmp.eq.s32.totalorder %s21, 0
      %p114 = por %p112, %p113
      %p115 = scmp.ne.s32.totalorder %s104, %s107
      %p116 = scmp.eq.s32.totalorder %s26, 1
      %p117 = por %p115, %p116
      %p118 = scmp.ne.s32.totalorder %s107, %s108
      %p119 = scmp.eq.s32.totalorder %s26, 0
      %p120 = por %p118, %p119
      %p121 = scmp.ne.s32.totalorder %s107, %s108
      %p122 = scmp.eq.s32.totalorder %s27, 1
      %p123 = por %p121, %p122
      %p125 = scmp.ne.s32.totalorder %s108, %s124
      %p126 = scmp.eq.s32.totalorder %s27, 0
      %p127 = por %p125, %p126
      %s128 = ssub.s32 %s21, %s28
      %p129 = scmp.eq.s32.totalorder %s128, 0
      %s131 = sadd.s32 %s130, 1
      %s132 = scalar_select %p129, %s130, %s131
      %p135 = pneg %p129
      %p136 = scmp.eq.s32.totalorder %s21, 1
      %p137 = por %p135, %p136
      %p138 = scmp.ne.s32.totalorder %s130, %s133
      %p139 = scmp.eq.s32.totalorder %s21, 0
      %p140 = por %p138, %p139
      %p141 = scmp.ne.s32.totalorder %s130, %s133
      %p142 = scmp.eq.s32.totalorder %s26, 1
      %p143 = por %p141, %p142
      %p144 = scmp.ne.s32.totalorder %s133, %s134
      %p145 = scmp.eq.s32.totalorder %s26, 0
      %p146 = por %p144, %p145
      %p147 = scmp.ne.s32.totalorder %s133, %s134
      %p148 = scmp.eq.s32.totalorder %s27, 1
      %p149 = por %p147, %p148
      %p151 = scmp.ne.s32.totalorder %s134, %s150
      %p152 = scmp.eq.s32.totalorder %s27, 0
      %p153 = por %p151, %p152
      %p154 = scmp.le.s32.totalorder 1, %s21
      %p155 = scmp.lt.s32.totalorder %s21, 3
      %p156 = pnand %p154, %p155
      %p157 = pneg %p156
      // Predicated region
      $region9: #{tpu_custom_call.1} parent=5 // pred_check
        _
      $region10: #{tpu_custom_call.1} parent=5 // pred_check_branch
        %159 = sbr.rel (%p156) target = $region12
      $region11: #{tpu_custom_call.1} parent=5 // pred_region
        %s160 = ssub.s32 %s21, 1
        // Predicated region
        $region13: #{tpu_custom_call.1} parent=11 // pred_check
          %p161 = pneg %p68
        $region14: #{tpu_custom_call.1} parent=11 // pred_check_branch
          %163 = sbr.rel (%p161) target = $region16
        $region15: #{tpu_custom_call.1} parent=11 // pred_region
          %s165 = ssub.s32 1024, 1024
          %166 = vsyncadd [#allocation6], %s165
          %s167 = sshll.u32 [#allocation5], 4
          %s168 = int_to_ptr.vmem [resolvable:$true] %s167
          %173 = dma.hbm_to_vmem [thread:$0]  %s1, 1024, %s168, [#allocation6], 64, 64, 4
        $region16: #{tpu_custom_call.1} parent=11 // pred_fallthru
          _
      $region12: #{tpu_custom_call.1} parent=5 // pred_fallthru
        _
      %p174 = scmp.lt.s32.totalorder %s21, 2
      // Predicated region
      $region17: #{tpu_custom_call.1} parent=5 // pred_check
        %p175 = pneg %p174
      $region18: #{tpu_custom_call.1} parent=5 // pred_check_branch
        %177 = sbr.rel (%p175) target = $region20
      $region19: #{tpu_custom_call.1} parent=5 // pred_region
        // Predicated region
        $region21: #{tpu_custom_call.1} parent=19 // pred_check
          %p178 = pneg %p41
        $region22: #{tpu_custom_call.1} parent=19 // pred_check_branch
          %180 = sbr.rel (%p178) target = $region24
        $region23: #{tpu_custom_call.1} parent=19 // pred_region
          %s181 = sand.u32 %s31, 1
          %s182 = scalar_lea.sflag [#allocation3], %s181
          %s183 = sand.u32 %s31, 1
          %s184 = smul.addr %s183, 128
          %s185 = scalar_lea.vmem [#allocation2], %s184
          %s186 = smul.u32 16, %s21
          %s188 = ssub.s32 2048, 2048
          %189 = vsyncadd %s182, %s188
          %s190 = smul.addr %s186, 128
          %s191 = scalar_lea.hbm %s0, %s190
          %s192 = sshll.u32 %s185, 4
          %s193 = int_to_ptr.vmem [resolvable:$true] %s192
          %198 = dma.hbm_to_vmem [thread:$0]  %s191, 2048, %s193, %s182, 128, 128, 8
        $region24: #{tpu_custom_call.1} parent=19 // pred_fallthru
          _
      $region20: #{tpu_custom_call.1} parent=5 // pred_fallthru
        _
      %p199 = scmp.le.s32.totalorder 1, %s21
      %p200 = scmp.lt.s32.totalorder %s21, 3
      %p201 = pnand %p199, %p200
      %p202 = pneg %p201
      // Predicated region
      $region25: #{tpu_custom_call.1} parent=5 // pred_check
        _
      $region26: #{tpu_custom_call.1} parent=5 // pred_check_branch
        %204 = sbr.rel (%p201) target = $region28
      $region27: #{tpu_custom_call.1} parent=5 // pred_region
        %s205 = ssub.s32 %s21, 1
        %s206 = sand.u32 %s34, 1
        %s207 = scalar_lea.sflag [#allocation3], %s206
        %s208 = sand.u32 %s34, 1
        %s209 = smul.addr %s208, 128
        %s210 = scalar_lea.vmem [#allocation2], %s209
        // Predicated region
        $region29: #{tpu_custom_call.1} parent=27 // pred_check
          %p211 = pneg %p47
        $region30: #{tpu_custom_call.1} parent=27 // pred_check_branch
          %213 = sbr.rel (%p211) target = $region32
        $region31: #{tpu_custom_call.1} parent=27 // pred_region
          %214 = dma.done %s207, 2048
        $region32: #{tpu_custom_call.1} parent=27 // pred_fallthru
          _
        // Predicated region
        $region33: #{tpu_custom_call.1} parent=27 // pred_check
          %p215 = pneg %p68
        $region34: #{tpu_custom_call.1} parent=27 // pred_check_branch
          %217 = sbr.rel (%p215) target = $region36
        $region35: #{tpu_custom_call.1} parent=27 // pred_region
          %218 = dma.done [#allocation6], 1024
        $region36: #{tpu_custom_call.1} parent=27 // pred_fallthru
          _
        %s219 = sand.u32 %s34, 1
        %s220 = scalar_lea.sflag [#allocation3], %s219
        %s221 = sand.u32 %s34, 1
        %s222 = smul.addr %s221, 128
        %s223 = scalar_lea.vmem [#allocation2], %s222
        %p224 = pneg %p47
        %p225 = pneg %p44
        %p226 = pneg %p68
        %p227 = pneg %p65
        %p228 = pneg %p94
        %p229 = pneg %p91
        %s230 = sand.u32 %s81, 1
        %s231 = scalar_lea.sflag [#allocation4], %s230
        %s232 = sand.u32 %s81, 1
        %s233 = smul.addr %s232, 128
        %s234 = scalar_lea.vmem [#allocation7], %s233
        %p235 = pneg %p120
        %p236 = pneg %p117
        %s237 = sand.u32 %s26, 1
        %s238 = scalar_lea.sflag [#allocation9], %s237
        %s239 = sand.u32 %s107, 1
        %s240 = scalar_lea.vmem [#allocation8], %s239
        %p241 = pneg %p146
        %p242 = pneg %p143
        %s243 = sand.u32 %s26, 1
        %s244 = scalar_lea.sflag [#allocation9], %s243
        %s245 = sand.u32 %s133, 1
        %s246 = scalar_lea.vmem [#allocation10], %s245
        %s247 = smul.u32 16, %s26
        %s248 = smul.u32 16, %s26
        %v250 = vld [vmem:[%s210] sm:$0xff]
        %v251 = vld [vmem:[%s210 + $0x8] sm:$0xff]
        %v252 = vld [vmem:[%s210 + $0x10] sm:$0xff]
        %v253 = vld [vmem:[%s210 + $0x18] sm:$0xff]
        %v254 = vld [vmem:[%s210 + $0x20] sm:$0xff]
        %v255 = vld [vmem:[%s210 + $0x28] sm:$0xff]
        %v256 = vld [vmem:[%s210 + $0x30] sm:$0xff]
        %v257 = vld [vmem:[%s210 + $0x38] sm:$0xff]
        %v258 = vld [vmem:[%s210 + $0x40] sm:$0xff]
        %v259 = vld [vmem:[%s210 + $0x48] sm:$0xff]
        %v260 = vld [vmem:[%s210 + $0x50] sm:$0xff]
        %v261 = vld [vmem:[%s210 + $0x58] sm:$0xff]
        %v262 = vld [vmem:[%s210 + $0x60] sm:$0xff]
        %v263 = vld [vmem:[%s210 + $0x68] sm:$0xff]
        %v264 = vld [vmem:[%s210 + $0x70] sm:$0xff]
        %v265 = vld [vmem:[%s210 + $0x78] sm:$0xff]
        %v266 = vpack.c.bf16 %v251, %v250
        %v267 = vpack.c.bf16 %v253, %v252
        %v268 = vpack.c.bf16 %v255, %v254
        %v269 = vpack.c.bf16 %v257, %v256
        %v270 = vpack.c.bf16 %v259, %v258
        %v271 = vpack.c.bf16 %v261, %v260
        %v272 = vpack.c.bf16 %v263, %v262
        %v273 = vpack.c.bf16 %v265, %v264
        %v274 = vld [vmem:[#allocation5] sm:$0xf]
        %v275 = vld [vmem:[#allocation5 + $0x4] sm:$0xf]
        %v276 = vld [vmem:[#allocation5 + $0x8] sm:$0xf]
        %v277 = vld [vmem:[#allocation5 + $0xc] sm:$0xf]
        %v278 = vld [vmem:[#allocation5 + $0x10] sm:$0xf]
        %v279 = vld [vmem:[#allocation5 + $0x14] sm:$0xf]
        %v280 = vld [vmem:[#allocation5 + $0x18] sm:$0xf]
        %v281 = vld [vmem:[#allocation5 + $0x1c] sm:$0xf]
        %v282 = vld [vmem:[#allocation5 + $0x20] sm:$0xf]
        %v283 = vld [vmem:[#allocation5 + $0x24] sm:$0xf]
        %v284 = vld [vmem:[#allocation5 + $0x28] sm:$0xf]
        %v285 = vld [vmem:[#allocation5 + $0x2c] sm:$0xf]
        %v286 = vld [vmem:[#allocation5 + $0x30] sm:$0xf]
        %v287 = vld [vmem:[#allocation5 + $0x34] sm:$0xf]
        %v288 = vld [vmem:[#allocation5 + $0x38] sm:$0xf]
        %v289 = vld [vmem:[#allocation5 + $0x3c] sm:$0xf]
        %v306 = vunpack.c.l.b16 %v274
        %v307 = vunpack.c.l.b16 %v275
        %v308 = vunpack.c.l.b16 %v276
        %v309 = vunpack.c.l.b16 %v277
        %v310 = vunpack.c.l.b16 %v278
        %v311 = vunpack.c.l.b16 %v279
        %v312 = vunpack.c.l.b16 %v280
        %v313 = vunpack.c.l.b16 %v281
        %v314 = vunpack.c.l.b16 %v282
        %v315 = vunpack.c.l.b16 %v283
        %v316 = vunpack.c.l.b16 %v284
        %v317 = vunpack.c.l.b16 %v285
        %v318 = vunpack.c.l.b16 %v286
        %v319 = vunpack.c.l.b16 %v287
        %v320 = vunpack.c.l.b16 %v288
        %v321 = vunpack.c.l.b16 %v289
        %v322 = vpack.c.b16 %v307, %v306
        %v323 = vpack.c.b16 %v309, %v308
        %v324 = vpack.c.b16 %v311, %v310
        %v325 = vpack.c.b16 %v313, %v312
        %v326 = vpack.c.b16 %v315, %v314
        %v327 = vpack.c.b16 %v317, %v316
        %v328 = vpack.c.b16 %v319, %v318
        %v329 = vpack.c.b16 %v321, %v320
        %338 = vmatprep.subr.bf16.mxu0 0
        %339 = vmatpush1.bf16.msra.mxu0 %v322
        %340 = vmatprep.subr.bf16.mxu0 0
        %341 = vmatpush1.bf16.msra.mxu0 %v323
        %342 = vmatprep.subr.bf16.mxu0 0
        %343 = vmatpush1.bf16.msra.mxu0 %v324
        %344 = vmatprep.subr.bf16.mxu0 0
        %345 = vmatpush1.bf16.msra.mxu0 %v325
        %346 = vmatprep.subr.bf16.mxu0 0
        %347 = vmatpush1.bf16.msra.mxu0 %v326
        %348 = vmatprep.subr.bf16.mxu0 0
        %349 = vmatpush1.bf16.msra.mxu0 %v327
        %350 = vmatprep.subr.bf16.mxu0 0
        %351 = vmatpush1.bf16.msra.mxu0 %v328
        %352 = vmatprep.subr.bf16.mxu0 0
        %353 = vmatpush1.bf16.msra.mxu0 %v329
        %354 = vmatprep.subr.bf16.mxu0 0
        %355 = vmatpush1.bf16.msra.mxu0 0
        %356 = vmatprep.subr.bf16.mxu0 0
        %357 = vmatpush1.bf16.msra.mxu0 0
        %358 = vmatprep.subr.bf16.mxu0 0
        %359 = vmatpush1.bf16.msra.mxu0 0
        %360 = vmatprep.subr.bf16.mxu0 0
        %361 = vmatpush1.bf16.msra.mxu0 0
        %362 = vmatprep.subr.bf16.mxu0 0
        %363 = vmatpush1.bf16.msra.mxu0 0
        %364 = vmatprep.subr.bf16.mxu0 0
        %365 = vmatpush1.bf16.msra.mxu0 0
        %366 = vmatprep.subr.bf16.mxu0 0
        %367 = vmatpush1.bf16.msra.mxu0 0
        %368 = vmatprep.subr.bf16.mxu0 0
        %369 = vmatpush1.bf16.msra.mxu0 0
        %370 = vmatprep.mubr.bf16.mxu0 0
        %371 = vmatmul.mubr.bf16.gmra.mrb[0].mxu0 %v266
        %v372 = vpop.f32.mrb[0].mxu0
        %v373 = vadd.f32 0.0, %v372
        %v374 = vpop.f32.mrb[0].mxu0
        %v375 = vpop.f32.mrb[0].mxu0
        %v376 = vadd.f32 0.0, %v375
        %v377 = vpop.f32.mrb[0].mxu0
        %378 = vmatprep.mubr.bf16.mxu0 0
        %379 = vmatmul.mubr.bf16.gmra.mrb[0].mxu0 %v267
        %v380 = vpop.f32.mrb[0].mxu0
        %v381 = vadd.f32 0.0, %v380
        %v382 = vpop.f32.mrb[0].mxu0
        %v383 = vpop.f32.mrb[0].mxu0
        %v384 = vadd.f32 0.0, %v383
        %v385 = vpop.f32.mrb[0].mxu0
        %386 = vmatprep.mubr.bf16.mxu0 0
        %387 = vmatmul.mubr.bf16.gmra.mrb[0].mxu0 %v268
        %v388 = vpop.f32.mrb[0].mxu0
        %v389 = vadd.f32 0.0, %v388
        %v390 = vpop.f32.mrb[0].mxu0
        %v391 = vpop.f32.mrb[0].mxu0
        %v392 = vadd.f32 0.0, %v391
        %v393 = vpop.f32.mrb[0].mxu0
        %394 = vmatprep.mubr.bf16.mxu0 0
        %395 = vmatmul.mubr.bf16.gmra.mrb[0].mxu0 %v269
        %v396 = vpop.f32.mrb[0].mxu0
        %v397 = vadd.f32 0.0, %v396
        %v398 = vpop.f32.mrb[0].mxu0
        %v399 = vpop.f32.mrb[0].mxu0
        %v400 = vadd.f32 0.0, %v399
        %v401 = vpop.f32.mrb[0].mxu0
        %402 = vmatprep.mubr.bf16.mxu0 0
        %403 = vmatmul.mubr.bf16.gmra.mrb[0].mxu0 %v270
        %v404 = vpop.f32.mrb[0].mxu0
        %v405 = vadd.f32 0.0, %v404
        %v406 = vpop.f32.mrb[0].mxu0
        %v407 = vpop.f32.mrb[0].mxu0
        %v408 = vadd.f32 0.0, %v407
        %v409 = vpop.f32.mrb[0].mxu0
        %410 = vmatprep.mubr.bf16.mxu0 0
        %411 = vmatmul.mubr.bf16.gmra.mrb[0].mxu0 %v271
        %v412 = vpop.f32.mrb[0].mxu0
        %v413 = vadd.f32 0.0, %v412
        %v414 = vpop.f32.mrb[0].mxu0
        %v415 = vpop.f32.mrb[0].mxu0
        %v416 = vadd.f32 0.0, %v415
        %v417 = vpop.f32.mrb[0].mxu0
        %418 = vmatprep.mubr.bf16.mxu0 0
        %419 = vmatmul.mubr.bf16.gmra.mrb[0].mxu0 %v272
        %v420 = vpop.f32.mrb[0].mxu0
        %v421 = vadd.f32 0.0, %v420
        %v422 = vpop.f32.mrb[0].mxu0
        %v423 = vpop.f32.mrb[0].mxu0
        %v424 = vadd.f32 0.0, %v423
        %v425 = vpop.f32.mrb[0].mxu0
        %426 = vmatprep.mubr.bf16.mxu0 0
        %427 = vmatmul.mubr.bf16.gmra.mrb[0].mxu0 %v273
        %v428 = vpop.f32.mrb[0].mxu0
        %v429 = vadd.f32 0.0, %v428
        %v430 = vpop.f32.mrb[0].mxu0
        %v431 = vpop.f32.mrb[0].mxu0
        %v432 = vadd.f32 0.0, %v431
        %v433 = vpop.f32.mrb[0].mxu0
        %434 = vdwg.mxu0
        %435 = vst [vmem:[%s234] sm:$0xff] %v373
        %436 = vst [vmem:[%s234 + $0x8] sm:$0xff] %v376
        %437 = vst [vmem:[%s234 + $0x10] sm:$0xff] %v381
        %438 = vst [vmem:[%s234 + $0x18] sm:$0xff] %v384
        %439 = vst [vmem:[%s234 + $0x20] sm:$0xff] %v389
        %440 = vst [vmem:[%s234 + $0x28] sm:$0xff] %v392
        %441 = vst [vmem:[%s234 + $0x30] sm:$0xff] %v397
        %442 = vst [vmem:[%s234 + $0x38] sm:$0xff] %v400
        %443 = vst [vmem:[%s234 + $0x40] sm:$0xff] %v405
        %444 = vst [vmem:[%s234 + $0x48] sm:$0xff] %v408
        %445 = vst [vmem:[%s234 + $0x50] sm:$0xff] %v413
        %446 = vst [vmem:[%s234 + $0x58] sm:$0xff] %v416
        %447 = vst [vmem:[%s234 + $0x60] sm:$0xff] %v421
        %448 = vst [vmem:[%s234 + $0x68] sm:$0xff] %v424
        %449 = vst [vmem:[%s234 + $0x70] sm:$0xff] %v429
        %450 = vst [vmem:[%s234 + $0x78] sm:$0xff] %v432
        %v451 = vadd.f32 %v373, %v376
        %v452 = vadd.f32 %v451, %v381
        %v453 = vadd.f32 %v452, %v384
        %v454 = vadd.f32 %v453, %v389
        %v455 = vadd.f32 %v454, %v392
        %v456 = vadd.f32 %v455, %v397
        %v457 = vadd.f32 %v456, %v400
        %v458 = vadd.f32 %v457, %v405
        %v459 = vadd.f32 %v458, %v408
        %v460 = vadd.f32 %v459, %v413
        %v461 = vadd.f32 %v460, %v416
        %v462 = vadd.f32 %v461, %v421
        %v463 = vadd.f32 %v462, %v424
        %v464 = vadd.f32 %v463, %v429
        %v465 = vadd.f32 %v464, %v432
        %v466 = vrot.slane %v465, 4
        %v467 = vadd.f32 %v465, %v466
        %v468 = vrot.slane %v467, 2
        %v469 = vadd.f32 %v467, %v468
        %v470 = vrot.slane %v469, 1
        %v471 = vadd.f32 %v469, %v470
        %472 = vst [vmem:[%s240] sm:$0x1] %v471
        %v473 = vmul.f32 %v373, %v373
        %v474 = vmul.f32 %v376, %v376
        %v475 = vmul.f32 %v381, %v381
        %v476 = vmul.f32 %v384, %v384
        %v477 = vmul.f32 %v389, %v389
        %v478 = vmul.f32 %v392, %v392
        %v479 = vmul.f32 %v397, %v397
        %v480 = vmul.f32 %v400, %v400
        %v481 = vmul.f32 %v405, %v405
        %v482 = vmul.f32 %v408, %v408
        %v483 = vmul.f32 %v413, %v413
        %v484 = vmul.f32 %v416, %v416
        %v485 = vmul.f32 %v421, %v421
        %v486 = vmul.f32 %v424, %v424
        %v487 = vmul.f32 %v429, %v429
        %v488 = vmul.f32 %v432, %v432
        %v489 = vadd.f32 %v473, %v474
        %v490 = vadd.f32 %v489, %v475
        %v491 = vadd.f32 %v490, %v476
        %v492 = vadd.f32 %v491, %v477
        %v493 = vadd.f32 %v492, %v478
        %v494 = vadd.f32 %v493, %v479
        %v495 = vadd.f32 %v494, %v480
        %v496 = vadd.f32 %v495, %v481
        %v497 = vadd.f32 %v496, %v482
        %v498 = vadd.f32 %v497, %v483
        %v499 = vadd.f32 %v498, %v484
        %v500 = vadd.f32 %v499, %v485
        %v501 = vadd.f32 %v500, %v486
        %v502 = vadd.f32 %v501, %v487
        %v503 = vadd.f32 %v502, %v488
        %v504 = vrot.slane %v503, 4
        %v505 = vadd.f32 %v503, %v504
        %v506 = vrot.slane %v505, 2
        %v507 = vadd.f32 %v505, %v506
        %v508 = vrot.slane %v507, 1
        %v509 = vadd.f32 %v507, %v508
        %510 = vst [vmem:[%s246] sm:$0x1] %v509
        %s511 = sand.u32 %s81, 1
        %s512 = scalar_lea.sflag [#allocation4], %s511
        %s513 = sand.u32 %s81, 1
        %s514 = smul.addr %s513, 128
        %s515 = scalar_lea.vmem [#allocation7], %s514
        %s516 = sand.u32 %s26, 1
        %s517 = scalar_lea.sflag [#allocation9], %s516
        %s518 = sand.u32 %s107, 1
        %s519 = scalar_lea.vmem [#allocation8], %s518
        %s520 = sand.u32 %s26, 1
        %s521 = scalar_lea.sflag [#allocation9], %s520
        %s522 = sand.u32 %s133, 1
        %s523 = scalar_lea.vmem [#allocation10], %s522
        // Predicated region
        $region37: #{tpu_custom_call.1} parent=27 // pred_check
          %p524 = pneg %p91
        $region38: #{tpu_custom_call.1} parent=27 // pred_check_branch
          %526 = sbr.rel (%p524) target = $region40
        $region39: #{tpu_custom_call.1} parent=27 // pred_region
          %s527 = smul.u32 16, %s26
          %s529 = ssub.s32 2048, 2048
          %530 = vsyncadd %s512, %s529
          %s531 = smul.addr %s527, 128
          %s532 = scalar_lea.hbm %s2, %s531
          %s533 = sshll.u32 %s515, 4
          %s534 = int_to_ptr.vmem [resolvable:$true] %s533
          %539 = dma.vmem_to_hbm [thread:$0]  %s534, 2048, %s532, %s512, 128, 128, 8
        $region40: #{tpu_custom_call.1} parent=27 // pred_fallthru
          _
        // Predicated region
        $region41: #{tpu_custom_call.1} parent=27 // pred_check
          %p540 = pneg %p117
        $region42: #{tpu_custom_call.1} parent=27 // pred_check_branch
          %542 = sbr.rel (%p540) target = $region44
        $region43: #{tpu_custom_call.1} parent=27 // pred_region
          %s544 = ssub.s32 16, 16
          %545 = vsyncadd %s517, %s544
          %s546 = smul.addr %s26, 16
          %s547 = scalar_lea.hbm %s3, %s546
          %s549 = sshll.u32 %s519, 4
          %s550 = int_to_ptr.vmem [resolvable:$true] %s549
          %552 = dma.vmem_to_hbm [thread:$0]  %s550, 16, %s547, %s517
        $region44: #{tpu_custom_call.1} parent=27 // pred_fallthru
          _
        // Predicated region
        $region45: #{tpu_custom_call.1} parent=27 // pred_check
          %p553 = pneg %p143
        $region46: #{tpu_custom_call.1} parent=27 // pred_check_branch
          %555 = sbr.rel (%p553) target = $region48
        $region47: #{tpu_custom_call.1} parent=27 // pred_region
          %s557 = ssub.s32 16, 16
          %558 = vsyncadd %s521, %s557
          %s559 = smul.addr %s26, 16
          %s560 = scalar_lea.hbm %s4, %s559
          %s562 = sshll.u32 %s523, 4
          %s563 = int_to_ptr.vmem [resolvable:$true] %s562
          %565 = dma.vmem_to_hbm [thread:$0]  %s563, 16, %s560, %s521
        $region48: #{tpu_custom_call.1} parent=27 // pred_fallthru
          _
      $region28: #{tpu_custom_call.1} parent=5 // pred_fallthru
        _
      %p566 = scmp.le.s32.totalorder 2, %s21
      // Predicated region
      $region49: #{tpu_custom_call.1} parent=5 // pred_check
        %p567 = pneg %p566
      $region50: #{tpu_custom_call.1} parent=5 // pred_check_branch
        %569 = sbr.rel (%p567) target = $region52
      $region51: #{tpu_custom_call.1} parent=5 // pred_region
        %s570 = ssub.s32 %s21, 2
        // Predicated region
        $region53: #{tpu_custom_call.1} parent=51 // pred_check
          %p571 = pneg %p97
        $region54: #{tpu_custom_call.1} parent=51 // pred_check_branch
          %573 = sbr.rel (%p571) target = $region56
        $region55: #{tpu_custom_call.1} parent=51 // pred_region
          %s574 = sand.u32 %s82, 1
          %s575 = scalar_lea.sflag [#allocation4], %s574
          %s576 = sand.u32 %s82, 1
          %s577 = smul.addr %s576, 128
          %s578 = scalar_lea.vmem [#allocation7], %s577
          %579 = dma.done %s575, 2048
        $region56: #{tpu_custom_call.1} parent=51 // pred_fallthru
          _
        // Predicated region
        $region57: #{tpu_custom_call.1} parent=51 // pred_check
          %p580 = pneg %p123
        $region58: #{tpu_custom_call.1} parent=51 // pred_check_branch
          %582 = sbr.rel (%p580) target = $region60
        $region59: #{tpu_custom_call.1} parent=51 // pred_region
          %s583 = sand.u32 %s27, 1
          %s584 = scalar_lea.sflag [#allocation9], %s583
          %s585 = sand.u32 %s108, 1
          %s586 = scalar_lea.vmem [#allocation8], %s585
          %587 = dma.done %s584, 16
        $region60: #{tpu_custom_call.1} parent=51 // pred_fallthru
          _
        // Predicated region
        $region61: #{tpu_custom_call.1} parent=51 // pred_check
          %p588 = pneg %p149
        $region62: #{tpu_custom_call.1} parent=51 // pred_check_branch
          %590 = sbr.rel (%p588) target = $region64
        $region63: #{tpu_custom_call.1} parent=51 // pred_region
          %s591 = sand.u32 %s27, 1
          %s592 = scalar_lea.sflag [#allocation9], %s591
          %s593 = sand.u32 %s134, 1
          %s594 = scalar_lea.vmem [#allocation10], %s593
          %595 = dma.done %s592, 16
        $region64: #{tpu_custom_call.1} parent=51 // pred_fallthru
          _
      $region52: #{tpu_custom_call.1} parent=5 // pred_fallthru
        _
    $region6: #{tpu_custom_call.1} parent=1 // loop_footer
      %s25 = sadd.s32 1, %s21
    $region7: #{tpu_custom_call.1} parent=1 // loop_footer_branch
      %20 = sbr.rel target = $region3
    $region8: #{tpu_custom_call.1} parent=1 // loop_exit
      _
    %596 = vsyncpa [#allocation3], 1
    %s597 = scalar_lea.sflag [#allocation3], 1
    %598 = vsyncpa %s597, 1
    %599 = vsyncpa [#allocation6], 1
    %600 = vsyncpa [#allocation4], 1
    %s601 = scalar_lea.sflag [#allocation4], 1
    %602 = vsyncpa %s601, 1
    %603 = vsyncpa [#allocation9], 1
    %s604 = scalar_lea.sflag [#allocation9], 1
    %605 = vsyncpa %s604, 1

</llo_original>
